<compile_context>
chip_gen: v7x
topology: tpu7x:2x2x1
jax: 0.10.0
libtpu: 0.0.40
codegen_flags: <defaults>
</compile_context>

<pallas_src>
import jax
import jax.numpy as jnp
from jax.experimental import pallas as pl
from jax.experimental.pallas import tpu as pltpu

IN_FEATURES = 10
OUT_FEATURES = 2
LANES = 128


def _round_up(n: int, m: int) -> int:
    return ((n + m - 1) // m) * m


def _num_tensorcores() -> int:
    """Generation-aware: v7x has 2 TensorCores per chip, v5e/v6e have 1."""
    try:
        kind = jax.devices()[0].device_kind.lower()
        if "v7" in kind or "7x" in kind:
            return 2
    except Exception:
        pass
    return 1


def _choose_tiling(B: int, tb_max: int, num_tc: int):
    """Return (TB, B_pad) with TB a multiple of 128 (and of 1024 when grid > 1)."""
    tb_max = max(LANES, LANES * (tb_max // LANES))   # clamp to a lane multiple
    B128 = _round_up(B, LANES)

    # Fewest grid steps: one tile whenever it fits and there is no reason to split
    # (single TensorCore, or batch too small to split into multiple-of-1024 tiles).
    single_tile = B128 <= tb_max and (num_tc == 1 or B128 < 2 * 1024)
    if single_tile or B128 < 2 * 1024:
        return B128, B128

    # Multi-tile: each tile's sublane extent (TB // 128) must be a multiple of 8,
    # i.e. TB must be a multiple of 1024.
    tb_cap = max(1024, 1024 * (tb_max // 1024))
    B1024 = _round_up(B128, 1024)
    grid = pl.cdiv(B1024, tb_cap)
    grid = max(grid, num_tc)                         # keep every TensorCore busy (v7x)
    tb = _round_up(pl.cdiv(B1024, grid), 1024)
    return tb, grid * tb


def linear_kernel(w_ref, b_ref, x_ref, o_ref):
    """w_ref: SMEM (OUT*IN,); b_ref: SMEM (OUT,);
    x_ref: VMEM (IN, TB//128, 128); o_ref: VMEM (OUT, TB//128, 128)."""
    tbs = x_ref.shape[1]

    # Bias folded into the accumulator init; 10 scalar-broadcast FMAs per output row
    # on the VPU over dense (TB//128, 128) slabs (all 8 sublanes of every vreg used).
    acc = [jnp.full((tbs, LANES), b_ref[j], jnp.float32) for j in range(OUT_FEATURES)]
    for k in range(IN_FEATURES):
        xk = x_ref[k]                                  # (TB//128, 128) dense slab, read once
        for j in range(OUT_FEATURES):
            acc[j] = acc[j] + w_ref[j * IN_FEATURES + k] * xk   # scalar (SMEM) * vector FMA

    # Direct per-output-row stores — lane-dense, no concatenate / sublane shuffle.
    for j in range(OUT_FEATURES):
        o_ref[j] = acc[j].astype(o_ref.dtype)


def linear_pallas(x, w, b, *, tb_max=8192):
    """x: (B, IN) f32, w: (OUT, IN) (PyTorch layout), b: (OUT,) -> (B, OUT)."""
    B, in_f = x.shape
    assert in_f == IN_FEATURES

    num_tc = _num_tensorcores()
    TB, B_pad = _choose_tiling(B, tb_max, num_tc)
    grid_b = B_pad // TB
    TBS = TB // LANES

    if B_pad != B:
        # Padded rows produce bias-only outputs, sliced off below.
        x = jnp.pad(x, ((0, B_pad - B), (0, 0)))

    # Layout plumbing: batch on the lane axis, 3-D so each input row fills whole vregs.
    xT = x.T.reshape(IN_FEATURES, B_pad // LANES, LANES)

    w_flat = w.reshape(-1).astype(jnp.float32)        # (OUT*IN,) flat SMEM scalars
    b_flat = b.astype(jnp.float32)                    # (OUT,)

    bytes_accessed = (B_pad * IN_FEATURES + B_pad * OUT_FEATURES
                      + IN_FEATURES * OUT_FEATURES + OUT_FEATURES) * 4

    yT = pl.pallas_call(
        linear_kernel,
        out_shape=jax.ShapeDtypeStruct((OUT_FEATURES, B_pad // LANES, LANES), x.dtype),
        grid=(grid_b,),
        in_specs=[
            pl.BlockSpec(memory_space=pltpu.MemorySpace.SMEM),              # w (20,) scalars
            pl.BlockSpec(memory_space=pltpu.MemorySpace.SMEM),              # b (2,) scalars
            pl.BlockSpec((IN_FEATURES, TBS, LANES), lambda i: (0, i, 0)),   # x^T tile, lane-dense
        ],
        out_specs=pl.BlockSpec((OUT_FEATURES, TBS, LANES), lambda i: (0, i, 0)),
        compiler_params=pltpu.CompilerParams(
            dimension_semantics=("parallel",),          # batch tiles shard across TCs (v7x)
        ),
        cost_estimate=pl.CostEstimate(
            flops=2 * B_pad * IN_FEATURES * OUT_FEATURES,
            transcendentals=0,
            bytes_accessed=bytes_accessed,
        ),
    )(w_flat, b_flat, xT)

    # Back to (B, OUT) to match nn.Linear semantics (layout plumbing only).
    return yT.reshape(OUT_FEATURES, B_pad).T[:B]


def init_params(key):
    # Deterministic init mimicking PyTorch nn.Linear default:
    # U(-1/sqrt(fan_in), 1/sqrt(fan_in)) for both weight and bias.
    kw, kb = jax.random.split(key)
    bound = 1.0 / jnp.sqrt(jnp.float32(IN_FEATURES))
    w = jax.random.uniform(kw, (OUT_FEATURES, IN_FEATURES), jnp.float32,
                           minval=-bound, maxval=bound)   # PyTorch layout (OUT, IN)
    b = jax.random.uniform(kb, (OUT_FEATURES,), jnp.float32,
                           minval=-bound, maxval=bound)
    return w, b


if __name__ == "__main__":
    key = jax.random.PRNGKey(0)
    k_x, k_p = jax.random.split(key)

    # B=1000 exercises the padding path (1000 -> 1024) and, per the review, runs as a
    # single grid step on v5e/v6e (one 1024-lane tile).  Total data is ~40 KB.
    B = 1000
    x = jax.random.normal(k_x, (B, IN_FEATURES), jnp.float32)
    w, b = init_params(k_p)

    y = linear_pallas(x, w, b)
    jax.block_until_ready(y)

    # Correctness check against plain JAX reference (same math as torch.nn.Linear).
    y_ref = x @ w.T + b
    assert y.shape == (B, OUT_FEATURES)
    assert jnp.allclose(y, y_ref, atol=1e-5, rtol=1e-5)

    print("KERNEL_OK")
</pallas_src>

<mosaic_0001>
module attributes {stable_mosaic.version = 11 : i64} {
  func.func @linear_kernel(%arg0: i32, %arg1: memref<20xf32, #tpu.memory_space<smem>>, %arg2: memref<2xf32, #tpu.memory_space<smem>>, %arg3: memref<10x8x128xf32, #tpu.memory_space<vmem>>, %arg4: memref<2x8x128xf32, #tpu.memory_space<vmem>>) attributes {dimension_semantics = [#tpu.dimension_semantics<parallel>], iteration_bounds = array<i64: 1>, scalar_prefetch = 0 : i64, scratch_operands = 0 : i64, tpu.core_type = #tpu.core_type<tc>, window_params = [{transform_indices = @transform_0, window_bounds = array<i64: 20>}, {transform_indices = @transform_1, window_bounds = array<i64: 2>}, {transform_indices = @transform_2, window_bounds = array<i64: 10, 8, 128>}, {transform_indices = @transform_3, window_bounds = array<i64: 2, 8, 128>}]} {
    %c0 = arith.constant 0 : index
    %0 = memref.load %arg2[%c0] : memref<2xf32, #tpu.memory_space<smem>>
    %1 = vector.broadcast %0 : f32 to vector<8x128xf32>
    %c1 = arith.constant 1 : index
    %2 = memref.load %arg2[%c1] : memref<2xf32, #tpu.memory_space<smem>>
    %3 = vector.broadcast %2 : f32 to vector<8x128xf32>
    %c0_0 = arith.constant 0 : index
    %c0_1 = arith.constant 0 : index
    %c0_2 = arith.constant 0 : index
    %4 = vector.load %arg3[%c0_0, %c0_1, %c0_2] : memref<10x8x128xf32, #tpu.memory_space<vmem>>, vector<1x8x128xf32>
    %5 = vector.shape_cast %4 : vector<1x8x128xf32> to vector<8x128xf32>
    %c0_3 = arith.constant 0 : index
    %6 = memref.load %arg1[%c0_3] : memref<20xf32, #tpu.memory_space<smem>>
    %7 = vector.broadcast %6 : f32 to vector<8x128xf32>
    %8 = arith.mulf %7, %5 : vector<8x128xf32>
    %9 = arith.addf %1, %8 : vector<8x128xf32>
    %c10 = arith.constant 10 : index
    %10 = memref.load %arg1[%c10] : memref<20xf32, #tpu.memory_space<smem>>
    %11 = vector.broadcast %10 : f32 to vector<8x128xf32>
    %12 = arith.mulf %11, %5 : vector<8x128xf32>
    %13 = arith.addf %3, %12 : vector<8x128xf32>
    %c1_4 = arith.constant 1 : index
    %c0_5 = arith.constant 0 : index
    %c0_6 = arith.constant 0 : index
    %14 = vector.load %arg3[%c1_4, %c0_5, %c0_6] : memref<10x8x128xf32, #tpu.memory_space<vmem>>, vector<1x8x128xf32>
    %15 = vector.shape_cast %14 : vector<1x8x128xf32> to vector<8x128xf32>
    %c1_7 = arith.constant 1 : index
    %16 = memref.load %arg1[%c1_7] : memref<20xf32, #tpu.memory_space<smem>>
    %17 = vector.broadcast %16 : f32 to vector<8x128xf32>
    %18 = arith.mulf %17, %15 : vector<8x128xf32>
    %19 = arith.addf %9, %18 : vector<8x128xf32>
    %c11 = arith.constant 11 : index
    %20 = memref.load %arg1[%c11] : memref<20xf32, #tpu.memory_space<smem>>
    %21 = vector.broadcast %20 : f32 to vector<8x128xf32>
    %22 = arith.mulf %21, %15 : vector<8x128xf32>
    %23 = arith.addf %13, %22 : vector<8x128xf32>
    %c2 = arith.constant 2 : index
    %c0_8 = arith.constant 0 : index
    %c0_9 = arith.constant 0 : index
    %24 = vector.load %arg3[%c2, %c0_8, %c0_9] : memref<10x8x128xf32, #tpu.memory_space<vmem>>, vector<1x8x128xf32>
    %25 = vector.shape_cast %24 : vector<1x8x128xf32> to vector<8x128xf32>
    %c2_10 = arith.constant 2 : index
    %26 = memref.load %arg1[%c2_10] : memref<20xf32, #tpu.memory_space<smem>>
    %27 = vector.broadcast %26 : f32 to vector<8x128xf32>
    %28 = arith.mulf %27, %25 : vector<8x128xf32>
    %29 = arith.addf %19, %28 : vector<8x128xf32>
    %c12 = arith.constant 12 : index
    %30 = memref.load %arg1[%c12] : memref<20xf32, #tpu.memory_space<smem>>
    %31 = vector.broadcast %30 : f32 to vector<8x128xf32>
    %32 = arith.mulf %31, %25 : vector<8x128xf32>
    %33 = arith.addf %23, %32 : vector<8x128xf32>
    %c3 = arith.constant 3 : index
    %c0_11 = arith.constant 0 : index
    %c0_12 = arith.constant 0 : index
    %34 = vector.load %arg3[%c3, %c0_11, %c0_12] : memref<10x8x128xf32, #tpu.memory_space<vmem>>, vector<1x8x128xf32>
    %35 = vector.shape_cast %34 : vector<1x8x128xf32> to vector<8x128xf32>
    %c3_13 = arith.constant 3 : index
    %36 = memref.load %arg1[%c3_13] : memref<20xf32, #tpu.memory_space<smem>>
    %37 = vector.broadcast %36 : f32 to vector<8x128xf32>
    %38 = arith.mulf %37, %35 : vector<8x128xf32>
    %39 = arith.addf %29, %38 : vector<8x128xf32>
    %c13 = arith.constant 13 : index
    %40 = memref.load %arg1[%c13] : memref<20xf32, #tpu.memory_space<smem>>
    %41 = vector.broadcast %40 : f32 to vector<8x128xf32>
    %42 = arith.mulf %41, %35 : vector<8x128xf32>
    %43 = arith.addf %33, %42 : vector<8x128xf32>
    %c4 = arith.constant 4 : index
    %c0_14 = arith.constant 0 : index
    %c0_15 = arith.constant 0 : index
    %44 = vector.load %arg3[%c4, %c0_14, %c0_15] : memref<10x8x128xf32, #tpu.memory_space<vmem>>, vector<1x8x128xf32>
    %45 = vector.shape_cast %44 : vector<1x8x128xf32> to vector<8x128xf32>
    %c4_16 = arith.constant 4 : index
    %46 = memref.load %arg1[%c4_16] : memref<20xf32, #tpu.memory_space<smem>>
    %47 = vector.broadcast %46 : f32 to vector<8x128xf32>
    %48 = arith.mulf %47, %45 : vector<8x128xf32>
    %49 = arith.addf %39, %48 : vector<8x128xf32>
    %c14 = arith.constant 14 : index
    %50 = memref.load %arg1[%c14] : memref<20xf32, #tpu.memory_space<smem>>
    %51 = vector.broadcast %50 : f32 to vector<8x128xf32>
    %52 = arith.mulf %51, %45 : vector<8x128xf32>
    %53 = arith.addf %43, %52 : vector<8x128xf32>
    %c5 = arith.constant 5 : index
    %c0_17 = arith.constant 0 : index
    %c0_18 = arith.constant 0 : index
    %54 = vector.load %arg3[%c5, %c0_17, %c0_18] : memref<10x8x128xf32, #tpu.memory_space<vmem>>, vector<1x8x128xf32>
    %55 = vector.shape_cast %54 : vector<1x8x128xf32> to vector<8x128xf32>
    %c5_19 = arith.constant 5 : index
    %56 = memref.load %arg1[%c5_19] : memref<20xf32, #tpu.memory_space<smem>>
    %57 = vector.broadcast %56 : f32 to vector<8x128xf32>
    %58 = arith.mulf %57, %55 : vector<8x128xf32>
    %59 = arith.addf %49, %58 : vector<8x128xf32>
    %c15 = arith.constant 15 : index
    %60 = memref.load %arg1[%c15] : memref<20xf32, #tpu.memory_space<smem>>
    %61 = vector.broadcast %60 : f32 to vector<8x128xf32>
    %62 = arith.mulf %61, %55 : vector<8x128xf32>
    %63 = arith.addf %53, %62 : vector<8x128xf32>
    %c6 = arith.constant 6 : index
    %c0_20 = arith.constant 0 : index
    %c0_21 = arith.constant 0 : index
    %64 = vector.load %arg3[%c6, %c0_20, %c0_21] : memref<10x8x128xf32, #tpu.memory_space<vmem>>, vector<1x8x128xf32>
    %65 = vector.shape_cast %64 : vector<1x8x128xf32> to vector<8x128xf32>
    %c6_22 = arith.constant 6 : index
    %66 = memref.load %arg1[%c6_22] : memref<20xf32, #tpu.memory_space<smem>>
    %67 = vector.broadcast %66 : f32 to vector<8x128xf32>
    %68 = arith.mulf %67, %65 : vector<8x128xf32>
    %69 = arith.addf %59, %68 : vector<8x128xf32>
    %c16 = arith.constant 16 : index
    %70 = memref.load %arg1[%c16] : memref<20xf32, #tpu.memory_space<smem>>
    %71 = vector.broadcast %70 : f32 to vector<8x128xf32>
    %72 = arith.mulf %71, %65 : vector<8x128xf32>
    %73 = arith.addf %63, %72 : vector<8x128xf32>
    %c7 = arith.constant 7 : index
    %c0_23 = arith.constant 0 : index
    %c0_24 = arith.constant 0 : index
    %74 = vector.load %arg3[%c7, %c0_23, %c0_24] : memref<10x8x128xf32, #tpu.memory_space<vmem>>, vector<1x8x128xf32>
    %75 = vector.shape_cast %74 : vector<1x8x128xf32> to vector<8x128xf32>
    %c7_25 = arith.constant 7 : index
    %76 = memref.load %arg1[%c7_25] : memref<20xf32, #tpu.memory_space<smem>>
    %77 = vector.broadcast %76 : f32 to vector<8x128xf32>
    %78 = arith.mulf %77, %75 : vector<8x128xf32>
    %79 = arith.addf %69, %78 : vector<8x128xf32>
    %c17 = arith.constant 17 : index
    %80 = memref.load %arg1[%c17] : memref<20xf32, #tpu.memory_space<smem>>
    %81 = vector.broadcast %80 : f32 to vector<8x128xf32>
    %82 = arith.mulf %81, %75 : vector<8x128xf32>
    %83 = arith.addf %73, %82 : vector<8x128xf32>
    %c8 = arith.constant 8 : index
    %c0_26 = arith.constant 0 : index
    %c0_27 = arith.constant 0 : index
    %84 = vector.load %arg3[%c8, %c0_26, %c0_27] : memref<10x8x128xf32, #tpu.memory_space<vmem>>, vector<1x8x128xf32>
    %85 = vector.shape_cast %84 : vector<1x8x128xf32> to vector<8x128xf32>
    %c8_28 = arith.constant 8 : index
    %86 = memref.load %arg1[%c8_28] : memref<20xf32, #tpu.memory_space<smem>>
    %87 = vector.broadcast %86 : f32 to vector<8x128xf32>
    %88 = arith.mulf %87, %85 : vector<8x128xf32>
    %89 = arith.addf %79, %88 : vector<8x128xf32>
    %c18 = arith.constant 18 : index
    %90 = memref.load %arg1[%c18] : memref<20xf32, #tpu.memory_space<smem>>
    %91 = vector.broadcast %90 : f32 to vector<8x128xf32>
    %92 = arith.mulf %91, %85 : vector<8x128xf32>
    %93 = arith.addf %83, %92 : vector<8x128xf32>
    %c9 = arith.constant 9 : index
    %c0_29 = arith.constant 0 : index
    %c0_30 = arith.constant 0 : index
    %94 = vector.load %arg3[%c9, %c0_29, %c0_30] : memref<10x8x128xf32, #tpu.memory_space<vmem>>, vector<1x8x128xf32>
    %95 = vector.shape_cast %94 : vector<1x8x128xf32> to vector<8x128xf32>
    %c9_31 = arith.constant 9 : index
    %96 = memref.load %arg1[%c9_31] : memref<20xf32, #tpu.memory_space<smem>>
    %97 = vector.broadcast %96 : f32 to vector<8x128xf32>
    %98 = arith.mulf %97, %95 : vector<8x128xf32>
    %99 = arith.addf %89, %98 : vector<8x128xf32>
    %c19 = arith.constant 19 : index
    %100 = memref.load %arg1[%c19] : memref<20xf32, #tpu.memory_space<smem>>
    %101 = vector.broadcast %100 : f32 to vector<8x128xf32>
    %102 = arith.mulf %101, %95 : vector<8x128xf32>
    %103 = arith.addf %93, %102 : vector<8x128xf32>
    %c0_32 = arith.constant 0 : index
    %c0_33 = arith.constant 0 : index
    %c0_34 = arith.constant 0 : index
    %104 = vector.load %arg4[%c0_32, %c0_33, %c0_34] : memref<2x8x128xf32, #tpu.memory_space<vmem>>, vector<1x8x128xf32>
    %105 = vector.shape_cast %104 : vector<1x8x128xf32> to vector<8x128xf32>
    %106 = vector.shape_cast %99 : vector<8x128xf32> to vector<1x8x128xf32>
    tpu.vector_store %arg4[%c0_32, %c0_33, %c0_34], %106 {strides = array<i32>} : memref<2x8x128xf32, #tpu.memory_space<vmem>>, vector<1x8x128xf32>,
    %c1_35 = arith.constant 1 : index
    %c0_36 = arith.constant 0 : index
    %c0_37 = arith.constant 0 : index
    %107 = vector.load %arg4[%c1_35, %c0_36, %c0_37] : memref<2x8x128xf32, #tpu.memory_space<vmem>>, vector<1x8x128xf32>
    %108 = vector.shape_cast %107 : vector<1x8x128xf32> to vector<8x128xf32>
    %109 = vector.shape_cast %103 : vector<8x128xf32> to vector<1x8x128xf32>
    tpu.vector_store %arg4[%c1_35, %c0_36, %c0_37], %109 {strides = array<i32>} : memref<2x8x128xf32, #tpu.memory_space<vmem>>, vector<1x8x128xf32>,
    return
  }
  func.func @transform_0(%arg0: i32) -> i32 {
    %c0_i32 = arith.constant 0 : i32
    %c0_i32_0 = arith.constant 0 : i32
    return %c0_i32 : i32
  }
  func.func @transform_1(%arg0: i32) -> i32 {
    %c0_i32 = arith.constant 0 : i32
    %c0_i32_0 = arith.constant 0 : i32
    return %c0_i32 : i32
  }
  func.func @transform_2(%arg0: i32) -> (i32, i32, i32) {
    %c0_i32 = arith.constant 0 : i32
    %c0_i32_0 = arith.constant 0 : i32
    %c0_i32_1 = arith.constant 0 : i32
    return %c0_i32, %arg0, %c0_i32_0 : i32, i32, i32
  }
  func.func @transform_3(%arg0: i32) -> (i32, i32, i32) {
    %c0_i32 = arith.constant 0 : i32
    %c0_i32_0 = arith.constant 0 : i32
    %c0_i32_1 = arith.constant 0 : i32
    return %c0_i32, %arg0, %c0_i32_0 : i32, i32, i32
  }
}

</mosaic_0001>

<llo_original>
// kernel: tpu_custom_call.1
$region0: #{tpu_custom_call.1}
  #allocation0 [shape = 'u32[]', space=smem, size = 0x4, offset = 0x4, fixed_abs, tag = 'smem constant byte address 0x4 - core index']
  #allocation1 [shape = 'u32[144,128]{1,0:T(1,128)}', space=vmem, size = 0x12000, scoped, tag = 'internal scratch']
  %s0 = inlined_call_operand.hbm [shape: f32[20], index: 0, kind: input, shape index: {}]
  %s1 = inlined_call_operand.vmem [shape: f32[2], index: 1, kind: input, shape index: {}]
  %s2 = inlined_call_operand.hbm [shape: f32[10,8,128], index: 2, kind: input, shape index: {}]
  %s3 = inlined_call_operand.hbm [shape: f32[2,8,128], index: 3, kind: output, shape index: {}]
  %s4 = sld [smem:[#allocation0]]
  $region34: #{tpu_custom_call.1} parent=0
    _
  %s6 = ssub.s32 1, %s4
  %s7 = scalar_select 0, %s6, %s4
  $region1: #{tpu_custom_call.1} parent=0
    #allocation2 [shape = 'u8[512]{0}', space=smem, size = 0x200, scoped, tag = 'input window, operand 0, single buffered']
    #allocation3 [shape = 's32[1]{0}', space=sflag, size = 0x4, scoped, tag = 'scoped memory for tpu_custom_call.1']
    #allocation4 [shape = 's32[1]{0}', space=sflag, size = 0x4, scoped, tag = 'scoped memory for tpu_custom_call.1']
    #allocation5 [shape = 's32[1]{0}', space=sflag, size = 0x4, scoped, tag = 'scoped memory for tpu_custom_call.1']
    #allocation6 [shape = 's32[1]{0}', space=sflag, size = 0x4, scoped, tag = 'scoped memory for tpu_custom_call.1']
    #allocation7 [shape = 'u8[512]{0}', space=smem, size = 0x200, scoped, tag = 'input window, operand 1, single buffered']
    #allocation8 [shape = 'u8[40960]{0}', space=vmem, size = 0xa000, scoped, tag = 'input window, operand 2, single buffered']
    #allocation9 [shape = 'u8[8192]{0}', space=vmem, size = 0x2000, scoped, tag = 'output window, operand 0, single buffered']
    %8 = vsyncpa [#allocation5], 0
    %9 = vsyncpa [#allocation6], 0
    %10 = vsyncpa [#allocation3], 0
    %11 = vsyncpa [#allocation4], 0
    // Predicated region
    $region2: #{tpu_custom_call.1} parent=1 // pred_check
      _
    $region3: #{tpu_custom_call.1} parent=1 // pred_check_branch
      %13 = sbr.rel (0) target = $region5
    $region4: #{tpu_custom_call.1} parent=1 // pred_region
      %s15 = ssub.s32 16, 16
      %16 = vsyncadd [#allocation5], %s15
      %19 = dma.hbm_to_smem %s0, 16, [#allocation2], [#allocation5]
    $region5: #{tpu_custom_call.1} parent=1 // pred_fallthru
      _
    // Predicated region
    $region6: #{tpu_custom_call.1} parent=1 // pred_check
      _
    $region7: #{tpu_custom_call.1} parent=1 // pred_check_branch
      %21 = sbr.rel (0) target = $region9
    $region8: #{tpu_custom_call.1} parent=1 // pred_region
      %s23 = ssub.s32 16, 16
      %24 = vsyncadd [#allocation6], %s23
      %s26 = sshll.u32 %s1, 4
      %s27 = int_to_ptr.vmem [resolvable:$true] %s26
      %29 = dma.vmem_to_smem %s27, 16, [#allocation7], [#allocation6]
    $region9: #{tpu_custom_call.1} parent=1 // pred_fallthru
      _
    // Predicated region
    $region10: #{tpu_custom_call.1} parent=1 // pred_check
      _
    $region11: #{tpu_custom_call.1} parent=1 // pred_check_branch
      %31 = sbr.rel (0) target = $region13
    $region12: #{tpu_custom_call.1} parent=1 // pred_region
      %s33 = ssub.s32 1280, 1280
      %34 = vsyncadd [#allocation3], %s33
      %s35 = sshll.u32 [#allocation8], 4
      %s36 = int_to_ptr.vmem [resolvable:$true] %s35
      %41 = dma.hbm_to_vmem [thread:$0]  %s2, 1280, %s36, [#allocation3], 128, 128, 8
    $region13: #{tpu_custom_call.1} parent=1 // pred_fallthru
      _
    // Predicated region
    $region14: #{tpu_custom_call.1} parent=1 // pred_check
      _
    $region15: #{tpu_custom_call.1} parent=1 // pred_check_branch
      %43 = sbr.rel (0) target = $region17
    $region16: #{tpu_custom_call.1} parent=1 // pred_region
      %44 = dma.done [#allocation5], 16
    $region17: #{tpu_custom_call.1} parent=1 // pred_fallthru
      _
    // Predicated region
    $region18: #{tpu_custom_call.1} parent=1 // pred_check
      _
    $region19: #{tpu_custom_call.1} parent=1 // pred_check_branch
      %46 = sbr.rel (0) target = $region21
    $region20: #{tpu_custom_call.1} parent=1 // pred_region
      %47 = dma.done [#allocation6], 16
    $region21: #{tpu_custom_call.1} parent=1 // pred_fallthru
      _
    // Predicated region
    $region22: #{tpu_custom_call.1} parent=1 // pred_check
      _
    $region23: #{tpu_custom_call.1} parent=1 // pred_check_branch
      %49 = sbr.rel (0) target = $region25
    $region24: #{tpu_custom_call.1} parent=1 // pred_region
      %50 = dma.done [#allocation3], 1280
    $region25: #{tpu_custom_call.1} parent=1 // pred_fallthru
      _
    %51 = sfence
    %s52 = sld [smem:[#allocation7]]
    %v53 = vstv %s52
    %s54 = sld [smem:[#allocation7 + $0x1]]
    %v55 = vstv %s54
    %v56 = vld [vmem:[#allocation8] sm:$0xff]
    %s57 = sld [smem:[#allocation2]]
    %v58 = vstv %s57
    %v59 = vmul.f32 %v58, %v56
    %v60 = vadd.f32 %v53, %v59
    %s61 = sld [smem:[#allocation2 + $0xa]]
    %v62 = vstv %s61
    %v63 = vmul.f32 %v62, %v56
    %v64 = vadd.f32 %v55, %v63
    %s65 = scalar_lea.vmem [#allocation8], 8
    %v66 = vld [vmem:[%s65] sm:$0xff]
    %s67 = sld [smem:[#allocation2 + $0x1]]
    %v68 = vstv %s67
    %v69 = vmul.f32 %v68, %v66
    %v70 = vadd.f32 %v60, %v69
    %s71 = sld [smem:[#allocation2 + $0xb]]
    %v72 = vstv %s71
    %v73 = vmul.f32 %v72, %v66
    %v74 = vadd.f32 %v64, %v73
    %s75 = scalar_lea.vmem [#allocation8], 16
    %v76 = vld [vmem:[%s75] sm:$0xff]
    %s77 = sld [smem:[#allocation2 + $0x2]]
    %v78 = vstv %s77
    %v79 = vmul.f32 %v78, %v76
    %v80 = vadd.f32 %v70, %v79
    %s81 = sld [smem:[#allocation2 + $0xc]]
    %v82 = vstv %s81
    %v83 = vmul.f32 %v82, %v76
    %v84 = vadd.f32 %v74, %v83
    %s85 = scalar_lea.vmem [#allocation8], 24
    %v86 = vld [vmem:[%s85] sm:$0xff]
    %s87 = sld [smem:[#allocation2 + $0x3]]
    %v88 = vstv %s87
    %v89 = vmul.f32 %v88, %v86
    %v90 = vadd.f32 %v80, %v89
    %s91 = sld [smem:[#allocation2 + $0xd]]
    %v92 = vstv %s91
    %v93 = vmul.f32 %v92, %v86
    %v94 = vadd.f32 %v84, %v93
    %s95 = scalar_lea.vmem [#allocation8], 32
    %v96 = vld [vmem:[%s95] sm:$0xff]
    %s97 = sld [smem:[#allocation2 + $0x4]]
    %v98 = vstv %s97
    %v99 = vmul.f32 %v98, %v96
    %v100 = vadd.f32 %v90, %v99
    %s101 = sld [smem:[#allocation2 + $0xe]]
    %v102 = vstv %s101
    %v103 = vmul.f32 %v102, %v96
    %v104 = vadd.f32 %v94, %v103
    %s105 = scalar_lea.vmem [#allocation8], 40
    %v106 = vld [vmem:[%s105] sm:$0xff]
    %s107 = sld [smem:[#allocation2 + $0x5]]
    %v108 = vstv %s107
    %v109 = vmul.f32 %v108, %v106
    %v110 = vadd.f32 %v100, %v109
    %s111 = sld [smem:[#allocation2 + $0xf]]
    %v112 = vstv %s111
    %v113 = vmul.f32 %v112, %v106
    %v114 = vadd.f32 %v104, %v113
    %s115 = scalar_lea.vmem [#allocation8], 48
    %v116 = vld [vmem:[%s115] sm:$0xff]
    %s117 = sld [smem:[#allocation2 + $0x6]]
    %v118 = vstv %s117
    %v119 = vmul.f32 %v118, %v116
    %v120 = vadd.f32 %v110, %v119
    %s121 = sld [smem:[#allocation2 + $0x10]]
    %v122 = vstv %s121
    %v123 = vmul.f32 %v122, %v116
    %v124 = vadd.f32 %v114, %v123
    %s125 = scalar_lea.vmem [#allocation8], 56
    %v126 = vld [vmem:[%s125] sm:$0xff]
    %s127 = sld [smem:[#allocation2 + $0x7]]
    %v128 = vstv %s127
    %v129 = vmul.f32 %v128, %v126
    %v130 = vadd.f32 %v120, %v129
    %s131 = sld [smem:[#allocation2 + $0x11]]
    %v132 = vstv %s131
    %v133 = vmul.f32 %v132, %v126
    %v134 = vadd.f32 %v124, %v133
    %s135 = scalar_lea.vmem [#allocation8], 64
    %v136 = vld [vmem:[%s135] sm:$0xff]
    %s137 = sld [smem:[#allocation2 + $0x8]]
    %v138 = vstv %s137
    %v139 = vmul.f32 %v138, %v136
    %v140 = vadd.f32 %v130, %v139
    %s141 = sld [smem:[#allocation2 + $0x12]]
    %v142 = vstv %s141
    %v143 = vmul.f32 %v142, %v136
    %v144 = vadd.f32 %v134, %v143
    %s145 = scalar_lea.vmem [#allocation8], 72
    %v146 = vld [vmem:[%s145] sm:$0xff]
    %s147 = sld [smem:[#allocation2 + $0x9]]
    %v148 = vstv %s147
    %v149 = vmul.f32 %v148, %v146
    %v150 = vadd.f32 %v140, %v149
    %s151 = sld [smem:[#allocation2 + $0x13]]
    %v152 = vstv %s151
    %v153 = vmul.f32 %v152, %v146
    %v154 = vadd.f32 %v144, %v153
    %155 = vst [vmem:[#allocation9] sm:$0xff] %v150
    %s156 = scalar_lea.vmem [#allocation9], 8
    %157 = vst [vmem:[%s156] sm:$0xff] %v154
    // Predicated region
    $region26: #{tpu_custom_call.1} parent=1 // pred_check
      _
    $region27: #{tpu_custom_call.1} parent=1 // pred_check_branch
      %159 = sbr.rel (0) target = $region29
    $region28: #{tpu_custom_call.1} parent=1 // pred_region
      %s161 = ssub.s32 256, 256
      %162 = vsyncadd [#allocation4], %s161
      %s163 = sshll.u32 [#allocation9], 4
      %s164 = int_to_ptr.vmem [resolvable:$true] %s163
      %169 = dma.vmem_to_hbm [thread:$0]  %s164, 256, %s3, [#allocation4], 128, 128, 8
    $region29: #{tpu_custom_call.1} parent=1 // pred_fallthru
      _
    // Predicated region
    $region30: #{tpu_custom_call.1} parent=1 // pred_check
      _
    $region31: #{tpu_custom_call.1} parent=1 // pred_check_branch
      %171 = sbr.rel (0) target = $region33
    $region32: #{tpu_custom_call.1} parent=1 // pred_region
      %172 = dma.done [#allocation4], 256
    $region33: #{tpu_custom_call.1} parent=1 // pred_fallthru
      _
    %173 = vsyncpa [#allocation3], 1
    %174 = vsyncpa [#allocation4], 1
    %175 = vsyncpa [#allocation5], 1
    %176 = vsyncpa [#allocation6], 1

</llo_original>
